<compile_context>
chip_gen: v7x
topology: tpu7x:2x2x1
jax: 0.10.0
libtpu: 0.0.40
codegen_flags: <defaults>
</compile_context>

<pallas_src>
import functools

import jax
import jax.numpy as jnp
from jax.experimental import pallas as pl
from jax.experimental.pallas import tpu as pltpu


NEG_INF = -1e30


# ----------------------------------------------------------------------------
# VMEM / tile-size helpers
# ----------------------------------------------------------------------------
def _vmem_limit_bytes():
    """~85% of per-TensorCore VMEM (leaves compiler scratch + pipeline headroom).
    Falls back to a v7x-safe 64 MiB capacity if the query is unavailable."""
    cap = None
    try:
        info = pltpu.get_tpu_info()
        cap = getattr(info, "vmem_capacity_bytes", None)
    except Exception:
        cap = None
    if not cap:
        cap = 64 * 1024 * 1024
    return max(24 * 1024 * 1024, int(0.85 * int(cap)))


def _pick_row_tile(n, din, hf_pad, vmem_limit):
    """Largest projection row tile that divides n and fits the VMEM budget."""
    resident = din * hf_pad * 4 * 2 + hf_pad * 16 * 4 * 2     # W + alar, x2 bufs
    budget = max(vmem_limit - resident - 2 * 1024 * 1024, 1)
    per_row = (din * 4 * 2          # feat f32, x2 bufs
               + hf_pad * 2 * 2     # fp bf16 out, x2 bufs
               + hf_pad * 4         # f32 fp temporary
               + 64)                # scores out (tiny)
    for t in (1024, 512, 256, 128, 64, 32, 16, 8):
        if t <= n and n % t == 0 and t * per_row <= budget:
            return t
    return n


def _pick_dst_tile(n_dst, n_src, num_heads, hf_pad, *, with_attn, vmem_limit,
                   attn_bytes=2):
    """Largest dst-row tile whose REAL per-step footprint fits VMEM.

    Counts the resident fp slab (replicated per TensorCore on v7x), el, bias,
    double-buffered int8 adjacency / scores / rst / attn blocks, and the f32
    s/p/a temporaries that stay live across the unrolled head loop."""
    resident = (n_src * hf_pad * 2 * 2            # fp bf16, x2 bufs
                + num_heads * n_src * 4 * 2       # el f32, x2 bufs
                + hf_pad * 4 * 2)                 # bias
    budget = vmem_limit - resident - 4 * 1024 * 1024
    per_row = (n_src * 1 * 2                      # int8 adjacency strip, x2 bufs
               + 2 * num_heads * 4 * 2            # (el|er) scores tile, x2 bufs
               + hf_pad * 4 * 2                   # rst f32 slab, x2 bufs
               + n_src * 20)                      # f32 s/p/a (+bf16 a) live set
    if with_attn:
        per_row += num_heads * n_src * attn_bytes * 2   # attn strip, x2 bufs
    # Floor at 32: int8 native sublane tile is (32,128), bf16 is (16,128);
    # smaller tiles give sub-native layouts / heavy masked stores.
    candidates = [t for t in (2048, 1024, 512, 256, 128, 64, 32)
                  if t <= n_dst and n_dst % t == 0]
    if not candidates:
        return n_dst
    # Prefer >= 2 grid steps so both v7x TensorCores get work.
    multi = [t for t in candidates if t <= n_dst // 2]
    if multi:
        candidates = multi
    for t in candidates:
        if t * per_row <= budget:
            return t
    return candidates[-1]


# ----------------------------------------------------------------------------
# kernel 1: fused projection (all heads at once) + el/er scores
# ----------------------------------------------------------------------------
def gat_project_kernel(feat_ref, w_ref, alar_ref, fp_ref, sc_ref):
    # (TM, Din) @ (Din, HF_pad): one lane-dense MXU matmul for all heads.
    # Kept in f32 so el/er (which feed exp) match the reference closely; the
    # dominant-FLOP aggregation matmul in kernel 2 runs in bf16.
    fp = jnp.dot(feat_ref[...], w_ref[...], preferred_element_type=jnp.float32)
    # el/er for all heads via block-diagonal (HF_pad, 2H) matrix: cols [0,H)=el,
    # cols [H,2H)=er (padded rows are zero, so padding does not perturb scores).
    sc_ref[...] = jnp.dot(fp, alar_ref[...], preferred_element_type=jnp.float32)
    fp_ref[...] = fp.astype(fp_ref.dtype)


# ----------------------------------------------------------------------------
# kernel 2: per-dst-tile edge softmax + message aggregation
# ----------------------------------------------------------------------------
def gat_attn_kernel(fp_ref, el_ref, sc_ref, adj_ref, bias_ref, *out_refs,
                    num_heads, out_feats, negative_slope, with_attn):
    H, F = num_heads, out_feats
    if with_attn:
        rst_ref, attn_ref = out_refs
    else:
        (rst_ref,) = out_refs

    tm = adj_ref.shape[0]
    edge_mask = adj_ref[...] > 0          # (TM, Nsrc), int8 adjacency -> bool
    fp_all = fp_ref[...]                  # (Nsrc, HF_pad), bf16 MXU operand
    sc = sc_ref[...]                      # (TM, 2H) f32: er columns are [H, 2H)

    outs = []
    for h in range(H):                    # static loop, H is small
        el = el_ref[h]                    # (1, Nsrc)  src scores along lanes
        er = sc[:, H + h:H + h + 1]       # (TM, 1)    dst scores along sublanes
        s = er + el                       # (TM, Nsrc)
        s = jnp.where(s > 0, s, negative_slope * s)        # leaky relu (VPU)
        s = jnp.where(edge_mask, s, NEG_INF)

        # edge_softmax over incoming edges (src axis = lanes).  Every dst row
        # has >= 1 edge (the module rejects zero-in-degree graphs / self-loops
        # added), so exp(NEG_INF - m) underflows to exactly 0 and no post-exp
        # re-masking is needed.
        m = jnp.max(s, axis=-1, keepdims=True)
        p = jnp.exp(s - m)
        denom = jnp.sum(p, axis=-1, keepdims=True)
        a = p * pl.reciprocal(jnp.maximum(denom, 1e-30), approx=True)  # EUP slot

        a_lo = a.astype(fp_all.dtype)     # single f32->bf16 cast, reused twice
        if with_attn:
            attn_ref[h] = a_lo.astype(attn_ref.dtype)

        # rst_h[v] = sum_u a[v,u] * fp_h[u] : bf16 operands, f32 accumulate (MXU).
        # 16-lane slice of the resident slab; O(N*F) vs the O(TM*N) score work.
        fp_h = fp_all[:, h * F:(h + 1) * F]
        outs.append(jnp.dot(a_lo, fp_h, preferred_element_type=jnp.float32))

    # Lane-dense (TM, HF_pad) output slab + bias (padded lanes carry zeros).
    hf = H * F
    hf_pad = rst_ref.shape[-1]
    if hf_pad > hf:
        outs.append(jnp.zeros((tm, hf_pad - hf), jnp.float32))
    rst = jnp.concatenate(outs, axis=-1) + bias_ref[...]
    rst_ref[...] = rst.astype(rst_ref.dtype)


# ----------------------------------------------------------------------------
# wrapper
# ----------------------------------------------------------------------------
def gat_conv_pallas(feat, fc_weight, attn_l, attn_r, adj, bias_param,
                    *, num_heads, out_feats, negative_slope=0.2,
                    return_attention=True,
                    attn_dtype=jnp.bfloat16, agg_dtype=jnp.bfloat16):
    """feat: (N, Din) f32; fc_weight: (H*F, Din) (torch nn.Linear layout);
    attn_l/attn_r/bias_param: (1, H, F); adj: (N, N) with adj[v,u] != 0 iff edge u->v.

    Returns (rst (N,H,F) f32, attn) where attn is dense (H, N_dst, N_src) in
    `attn_dtype` (kernel-native layout, no host transpose), or None when
    return_attention=False (drops the dominant H*N^2 HBM writeback)."""
    N, Din = feat.shape
    H, F = num_heads, out_feats
    HF = H * F
    HF_pad = max(128, ((HF + 127) // 128) * 128)   # lane-dense fp/rst stores

    vmem_limit = _vmem_limit_bytes()

    # --- tiny parameter re-layout (plain-JAX glue, O(Din*HF)) ----------------
    w_all = fc_weight.T                                    # (Din, H*F)
    al = attn_l.reshape(H, F)
    ar = attn_r.reshape(H, F)
    eye = jnp.eye(H, dtype=feat.dtype)
    alar = jnp.concatenate(
        [jnp.einsum('hf,hg->hfg', al, eye).reshape(HF, H),
         jnp.einsum('hf,hg->hfg', ar, eye).reshape(HF, H)], axis=1)
    bias_flat = bias_param.reshape(1, HF)
    if HF_pad > HF:
        w_all = jnp.pad(w_all, ((0, 0), (0, HF_pad - HF)))
        alar = jnp.pad(alar, ((0, HF_pad - HF), (0, 0)))
        bias_flat = jnp.pad(bias_flat, ((0, 0), (0, HF_pad - HF)))
    adj_i8 = (adj != 0).astype(jnp.int8)                   # 4x less DMA than f32

    # --- kernel 1: fused projection across heads -----------------------------
    tmp = _pick_row_tile(N, Din, HF_pad, vmem_limit)
    fp_flat, scores = pl.pallas_call(
        gat_project_kernel,
        out_shape=(jax.ShapeDtypeStruct((N, HF_pad), agg_dtype),
                   jax.ShapeDtypeStruct((N, 2 * H), jnp.float32)),
        grid_spec=pltpu.PrefetchScalarGridSpec(
            num_scalar_prefetch=0,
            grid=(N // tmp,),
            in_specs=[
                pl.BlockSpec((tmp, Din), lambda i: (i, 0)),
                pl.BlockSpec((Din, HF_pad), lambda i: (0, 0)),
                pl.BlockSpec((HF_pad, 2 * H), lambda i: (0, 0)),
            ],
            out_specs=[
                pl.BlockSpec((tmp, HF_pad), lambda i: (i, 0)),
                pl.BlockSpec((tmp, 2 * H), lambda i: (i, 0)),
            ],
        ),
        compiler_params=pltpu.CompilerParams(
            dimension_semantics=("parallel",),
            vmem_limit_bytes=vmem_limit),
    )(feat, w_all, alar)

    # el re-layout: per-src scores along lanes (H, 1, N) -- tiny (N*H) transpose.
    # er stays in the raw (N, 2H) 'scores' layout; per-head column taken in-kernel
    # (no last-dim-1 strided block, no second host transpose).
    el_h1n = scores[:, :H].T[:, None, :]

    # --- kernel 2: dst-tiled edge softmax + aggregation ----------------------
    tm = _pick_dst_tile(N, N, H, HF_pad, with_attn=return_attention,
                        vmem_limit=vmem_limit)
    kernel = functools.partial(gat_attn_kernel, num_heads=H, out_feats=F,
                               negative_slope=negative_slope,
                               with_attn=return_attention)

    rst_shape = jax.ShapeDtypeStruct((N, HF_pad), jnp.float32)
    rst_spec = pl.BlockSpec((tm, HF_pad), lambda i: (i, 0))
    if return_attention:
        out_shape = (rst_shape, jax.ShapeDtypeStruct((H, N, N), attn_dtype))
        out_specs = [rst_spec, pl.BlockSpec((H, tm, N), lambda i: (0, i, 0))]
    else:
        out_shape = rst_shape
        out_specs = rst_spec

    result = pl.pallas_call(
        kernel,
        out_shape=out_shape,
        grid_spec=pltpu.PrefetchScalarGridSpec(
            num_scalar_prefetch=0,
            grid=(N // tm,),
            in_specs=[
                pl.BlockSpec((N, HF_pad), lambda i: (0, 0)),    # fp, all src/heads
                pl.BlockSpec((H, 1, N), lambda i: (0, 0, 0)),   # el (src, lanes)
                pl.BlockSpec((tm, 2 * H), lambda i: (i, 0)),    # scores tile (er)
                pl.BlockSpec((tm, N), lambda i: (i, 0)),        # adjacency strip
                pl.BlockSpec((1, HF_pad), lambda i: (0, 0)),    # bias
            ],
            out_specs=out_specs,
        ),
        compiler_params=pltpu.CompilerParams(
            dimension_semantics=("parallel",),
            vmem_limit_bytes=vmem_limit),
    )(fp_flat, el_h1n, scores, adj_i8, bias_flat)

    if return_attention:
        rst_flat, attn_hnn = result
    else:
        rst_flat, attn_hnn = result, None

    rst = rst_flat[:, :HF].reshape(N, H, F)                # (N, H, F) == PyTorch rst
    # Attention stays in kernel-native (H, N_dst, N_src) layout (no host transpose
    # that would re-stream the largest tensor); permute on demand if needed.
    # TODO(synk): PyTorch/DGL returns attention per-edge (E, H, 1); here it is dense
    # over (dst, src) node pairs (zero where no edge) -- gather edges outside if needed.
    return rst, attn_hnn


# ----------------------------------------------------------------------------
# pure-JAX reference mirroring the PyTorch forward
# ----------------------------------------------------------------------------
def gat_conv_ref(feat, fc_weight, attn_l, attn_r, adj, bias_param,
                 *, num_heads, out_feats, negative_slope=0.2):
    N = feat.shape[0]
    H, F = num_heads, out_feats
    fp = (feat @ fc_weight.T).reshape(N, H, F)
    el = (fp * attn_l).sum(-1)                             # (N, H)
    er = (fp * attn_r).sum(-1)                             # (N, H)
    s = el[None, :, :] + er[:, None, :]                    # (dst, src, H)
    s = jnp.where(s > 0, s, negative_slope * s)
    mask = (adj > 0)[:, :, None]
    s = jnp.where(mask, s, NEG_INF)
    p = jnp.exp(s - s.max(axis=1, keepdims=True))
    p = jnp.where(mask, p, 0.0)
    a = p / p.sum(axis=1, keepdims=True)
    rst = jnp.einsum('vuh,uhf->vhf', a, fp) + bias_param
    return rst, a


if __name__ == "__main__":
    # Module config (in_feats -> num_heads * out_feats), small shapes.
    N = 16            # number of graph nodes
    IN_FEATS = 32
    OUT_FEATS = 16
    NUM_HEADS = 4
    NEG_SLOPE = 0.2

    key = jax.random.PRNGKey(0)
    k_feat, k_adj, k_fc, k_al, k_ar = jax.random.split(key, 5)

    # Node features.
    feat = jax.random.normal(k_feat, (N, IN_FEATS), dtype=jnp.float32)

    # Deterministic random graph + self-loops (no zero-in-degree nodes; the
    # PyTorch module raises on zero-in-degree graphs, so this matches the spec).
    adj = (jax.random.uniform(k_adj, (N, N)) < 0.3).astype(jnp.float32)
    adj = jnp.maximum(adj, jnp.eye(N, dtype=jnp.float32))  # adj[v,u]=1 iff edge u->v

    # Parameters, xavier_normal_(gain=calculate_gain('relu')=sqrt(2)) style init.
    gain = jnp.sqrt(2.0)
    fc_std = gain * jnp.sqrt(2.0 / (IN_FEATS + NUM_HEADS * OUT_FEATS))
    fc_weight = fc_std * jax.random.normal(
        k_fc, (NUM_HEADS * OUT_FEATS, IN_FEATS), dtype=jnp.float32)
    attn_std = gain * jnp.sqrt(2.0 / (NUM_HEADS + OUT_FEATS))
    attn_l = attn_std * jax.random.normal(k_al, (1, NUM_HEADS, OUT_FEATS), jnp.float32)
    attn_r = attn_std * jax.random.normal(k_ar, (1, NUM_HEADS, OUT_FEATS), jnp.float32)
    bias_param = jnp.zeros((1, NUM_HEADS, OUT_FEATS), jnp.float32)  # torch.zeros init

    rst_ref, attn_ref = gat_conv_ref(
        feat, fc_weight, attn_l, attn_r, adj, bias_param,
        num_heads=NUM_HEADS, out_feats=OUT_FEATS, negative_slope=NEG_SLOPE)

    # Default path: rst + dense attention (kernel-native (H, N, N) layout).
    rst, attn = gat_conv_pallas(
        feat, fc_weight, attn_l, attn_r, adj, bias_param,
        num_heads=NUM_HEADS, out_feats=OUT_FEATS, negative_slope=NEG_SLOPE)
    rst = jax.block_until_ready(rst)
    attn = jax.block_until_ready(attn)

    assert rst.shape == (N, NUM_HEADS, OUT_FEATS)
    assert attn.shape == (NUM_HEADS, N, N)
    attn_ref_hnn = jnp.transpose(attn_ref, (2, 0, 1))      # reference -> (H, N, N)
    # rst uses bf16 MXU operands (f32 accumulate); attn is written back in bf16.
    assert jnp.allclose(rst, rst_ref, atol=3e-2, rtol=3e-2), \
        float(jnp.max(jnp.abs(rst - rst_ref)))
    assert jnp.allclose(attn.astype(jnp.float32), attn_ref_hnn, atol=2e-2, rtol=2e-2), \
        float(jnp.max(jnp.abs(attn.astype(jnp.float32) - attn_ref_hnn)))

    # Attention-free path: drops the dominant H*N^2 writeback stream entirely.
    rst2, attn2 = gat_conv_pallas(
        feat, fc_weight, attn_l, attn_r, adj, bias_param,
        num_heads=NUM_HEADS, out_feats=OUT_FEATS, negative_slope=NEG_SLOPE,
        return_attention=False)
    rst2 = jax.block_until_ready(rst2)
    assert attn2 is None
    assert jnp.allclose(rst2, rst_ref, atol=3e-2, rtol=3e-2), \
        float(jnp.max(jnp.abs(rst2 - rst_ref)))

    print("KERNEL_OK")
</pallas_src>

<mosaic_0001>
module attributes {stable_mosaic.version = 11 : i64} {
  func.func @gat_project_kernel(%arg0: i32, %arg1: memref<16x32xf32, #tpu.memory_space<vmem>>, %arg2: memref<32x128xf32, #tpu.memory_space<vmem>>, %arg3: memref<128x8xf32, #tpu.memory_space<vmem>>, %arg4: memref<16x128xbf16, #tpu.memory_space<vmem>>, %arg5: memref<16x8xf32, #tpu.memory_space<vmem>>) attributes {dimension_semantics = [#tpu.dimension_semantics<parallel>], iteration_bounds = array<i64: 1>, scalar_prefetch = 0 : i64, scratch_operands = 0 : i64, tpu.core_type = #tpu.core_type<tc>, window_params = [{transform_indices = @transform_0, window_bounds = array<i64: 16, 32>}, {pipeline_mode = #tpu.pipeline_mode<synchronous>, transform_indices = @transform_1, window_bounds = array<i64: 32, 128>}, {pipeline_mode = #tpu.pipeline_mode<synchronous>, transform_indices = @transform_2, window_bounds = array<i64: 128, 8>}, {transform_indices = @transform_3, window_bounds = array<i64: 16, 128>}, {transform_indices = @transform_4, window_bounds = array<i64: 16, 8>}]} {
    %c0 = arith.constant 0 : index
    %c0_0 = arith.constant 0 : index
    %0 = vector.load %arg1[%c0, %c0_0] : memref<16x32xf32, #tpu.memory_space<vmem>>, vector<16x32xf32>
    %c0_1 = arith.constant 0 : index
    %c0_2 = arith.constant 0 : index
    %1 = vector.load %arg2[%c0_1, %c0_2] : memref<32x128xf32, #tpu.memory_space<vmem>>, vector<32x128xf32>
    %cst = arith.constant dense<0.000000e+00> : vector<16x128xf32>
    %2 = tpu.matmul %0, %1, %cst {dimension_numbers = #tpu.dot_dimension_numbers<[1], [0], [0], [1], [0, 0, 1, 1], [], []>} : vector<16x32xf32>, vector<32x128xf32>, vector<16x128xf32> -> vector<16x128xf32>
    %c0_3 = arith.constant 0 : index
    %c0_4 = arith.constant 0 : index
    %3 = vector.load %arg3[%c0_3, %c0_4] : memref<128x8xf32, #tpu.memory_space<vmem>>, vector<128x8xf32>
    %cst_5 = arith.constant dense<0.000000e+00> : vector<16x8xf32>
    %4 = tpu.matmul %2, %3, %cst_5 {dimension_numbers = #tpu.dot_dimension_numbers<[1], [0], [0], [1], [0, 0, 1, 1], [], []>} : vector<16x128xf32>, vector<128x8xf32>, vector<16x8xf32> -> vector<16x8xf32>
    %c0_6 = arith.constant 0 : index
    %c0_7 = arith.constant 0 : index
    %5 = vector.load %arg5[%c0_6, %c0_7] : memref<16x8xf32, #tpu.memory_space<vmem>>, vector<16x8xf32>
    tpu.vector_store %arg5[%c0_6, %c0_7], %4 {strides = array<i32>} : memref<16x8xf32, #tpu.memory_space<vmem>>, vector<16x8xf32>,
    %6 = arith.truncf %2 : vector<16x128xf32> to vector<16x128xbf16>
    %c0_8 = arith.constant 0 : index
    %c0_9 = arith.constant 0 : index
    %7 = vector.load %arg4[%c0_8, %c0_9] : memref<16x128xbf16, #tpu.memory_space<vmem>>, vector<16x128xbf16>
    tpu.vector_store %arg4[%c0_8, %c0_9], %6 {strides = array<i32>} : memref<16x128xbf16, #tpu.memory_space<vmem>>, vector<16x128xbf16>,
    return
  }
  func.func @transform_0(%arg0: i32) -> (i32, i32) {
    %c0_i32 = arith.constant 0 : i32
    %c0_i32_0 = arith.constant 0 : i32
    return %arg0, %c0_i32 : i32, i32
  }
  func.func @transform_1(%arg0: i32) -> (i32, i32) {
    %c0_i32 = arith.constant 0 : i32
    %c0_i32_0 = arith.constant 0 : i32
    %c0_i32_1 = arith.constant 0 : i32
    return %c0_i32, %c0_i32_0 : i32, i32
  }
  func.func @transform_2(%arg0: i32) -> (i32, i32) {
    %c0_i32 = arith.constant 0 : i32
    %c0_i32_0 = arith.constant 0 : i32
    %c0_i32_1 = arith.constant 0 : i32
    return %c0_i32, %c0_i32_0 : i32, i32
  }
  func.func @transform_3(%arg0: i32) -> (i32, i32) {
    %c0_i32 = arith.constant 0 : i32
    %c0_i32_0 = arith.constant 0 : i32
    return %arg0, %c0_i32 : i32, i32
  }
  func.func @transform_4(%arg0: i32) -> (i32, i32) {
    %c0_i32 = arith.constant 0 : i32
    %c0_i32_0 = arith.constant 0 : i32
    return %arg0, %c0_i32 : i32, i32
  }
}

</mosaic_0001>

<llo_original>
// kernel: tpu_custom_call.1
$region0: #{tpu_custom_call.1}
  #allocation0 [shape = 'u32[]', space=smem, size = 0x4, offset = 0x4, fixed_abs, tag = 'smem constant byte address 0x4 - core index']
  #allocation1 [shape = 'u32[144,128]{1,0:T(1,128)}', space=vmem, size = 0x12000, scoped, tag = 'internal scratch']
  %s0 = inlined_call_operand.vmem [shape: f32[16,32], index: 0, kind: input, shape index: {}]
  %s1 = inlined_call_operand.vmem [shape: f32[32,128], index: 1, kind: input, shape index: {}]
  %s2 = inlined_call_operand.vmem [shape: f32[128,8], index: 2, kind: input, shape index: {}]
  %s3 = inlined_call_operand.hbm [shape: bf16[16,128], index: 3, kind: output, shape index: {0}]
  %s4 = inlined_call_operand.vmem [shape: f32[16,8], index: 4, kind: output, shape index: {1}]
  %5 = xla_tuple %s3, %s4
  %s6 = sld [smem:[#allocation0]]
  $region30: #{tpu_custom_call.1} parent=0
    _
  %s8 = ssub.s32 1, %s6
  %s9 = scalar_select 0, %s8, %s6
  $region1: #{tpu_custom_call.1} parent=0
    #allocation2 [shape = 'u8[4096]{0}', space=vmem, size = 0x1000, scoped, tag = 'output window, operand 0, single buffered']
    #allocation3 [shape = 's32[1]{0}', space=sflag, size = 0x4, scoped, tag = 'scoped memory for tpu_custom_call.1']
    %10 = vsyncpa [#allocation3], 0
    // Predicated region
    $region2: #{tpu_custom_call.1} parent=1 // pred_check
      _
    $region3: #{tpu_custom_call.1} parent=1 // pred_check_branch
      %12 = sbr.rel (0) target = $region5
    $region4: #{tpu_custom_call.1} parent=1 // pred_region
      _
    $region5: #{tpu_custom_call.1} parent=1 // pred_fallthru
      _
    // Predicated region
    $region6: #{tpu_custom_call.1} parent=1 // pred_check
      _
    $region7: #{tpu_custom_call.1} parent=1 // pred_check_branch
      %14 = sbr.rel (0) target = $region9
    $region8: #{tpu_custom_call.1} parent=1 // pred_region
      _
    $region9: #{tpu_custom_call.1} parent=1 // pred_fallthru
      _
    // Predicated region
    $region10: #{tpu_custom_call.1} parent=1 // pred_check
      _
    $region11: #{tpu_custom_call.1} parent=1 // pred_check_branch
      %16 = sbr.rel (0) target = $region13
    $region12: #{tpu_custom_call.1} parent=1 // pred_region
      _
    $region13: #{tpu_custom_call.1} parent=1 // pred_fallthru
      _
    %v17 = vld [vmem:[%s0] sm:$0xff]
    %v18 = vld [vmem:[%s0 + $0x8] sm:$0xff]
    %v19 = vld [vmem:[%s1] sm:$0xff]
    %v20 = vld [vmem:[%s1 + $0x8] sm:$0xff]
    %v21 = vld [vmem:[%s1 + $0x10] sm:$0xff]
    %v22 = vld [vmem:[%s1 + $0x18] sm:$0xff]
    %vm23 = vcmask 261120
    %v25 = vsel %vm23, %v17, 0
    %v28 = vsel %vm23, %v18, 0
    %30 = vmatprep.subr.mxu0 0.0
    %31 = vmatpush1.msra.mxu0 %v19
    %32 = vmatprep.subr.mxu0 0.0
    %33 = vmatpush1.msra.mxu0 %v20
    %34 = vmatprep.subr.mxu0 0.0
    %35 = vmatpush1.msra.mxu0 %v21
    %36 = vmatprep.subr.mxu0 0.0
    %37 = vmatpush1.msra.mxu0 %v22
    %38 = vmatprep.subr.mxu0 0.0
    %39 = vmatpush1.msra.mxu0 0.0
    %40 = vmatprep.subr.mxu0 0.0
    %41 = vmatpush1.msra.mxu0 0.0
    %42 = vmatprep.subr.mxu0 0.0
    %43 = vmatpush1.msra.mxu0 0.0
    %44 = vmatprep.subr.mxu0 0.0
    %45 = vmatpush1.msra.mxu0 0.0
    %46 = vmatprep.subr.mxu0 0.0
    %47 = vmatpush1.msra.mxu0 0.0
    %48 = vmatprep.subr.mxu0 0.0
    %49 = vmatpush1.msra.mxu0 0.0
    %50 = vmatprep.subr.mxu0 0.0
    %51 = vmatpush1.msra.mxu0 0.0
    %52 = vmatprep.subr.mxu0 0.0
    %53 = vmatpush1.msra.mxu0 0.0
    %54 = vmatprep.subr.mxu0 0.0
    %55 = vmatpush1.msra.mxu0 0.0
    %56 = vmatprep.subr.mxu0 0.0
    %57 = vmatpush1.msra.mxu0 0.0
    %58 = vmatprep.subr.mxu0 0.0
    %59 = vmatpush1.msra.mxu0 0.0
    %60 = vmatprep.subr.mxu0 0.0
    %61 = vmatpush1.msra.mxu0 0.0
    %62 = vmatprep.subr.mxu0 0.0
    %63 = vmatpush1.msra.mxu0 0.0
    %64 = vmatprep.subr.mxu0 0.0
    %65 = vmatpush1.msra.mxu0 0.0
    %66 = vmatprep.subr.mxu0 0.0
    %67 = vmatpush1.msra.mxu0 0.0
    %68 = vmatprep.subr.mxu0 0.0
    %69 = vmatpush1.msra.mxu0 0.0
    %70 = vmatprep.subr.mxu0 0.0
    %71 = vmatpush1.msra.mxu0 0.0
    %72 = vmatprep.subr.mxu0 0.0
    %73 = vmatpush1.msra.mxu0 0.0
    %74 = vmatprep.subr.mxu0 0.0
    %75 = vmatpush1.msra.mxu0 0.0
    %76 = vmatprep.subr.mxu0 0.0
    %77 = vmatpush1.msra.mxu0 0.0
    %78 = vmatprep.subr.mxu0 0.0
    %79 = vmatpush1.msra.mxu0 0.0
    %80 = vmatprep.subr.mxu0 0.0
    %81 = vmatpush1.msra.mxu0 0.0
    %82 = vmatprep.subr.mxu0 0.0
    %83 = vmatpush1.msra.mxu0 0.0
    %84 = vmatprep.subr.mxu0 0.0
    %85 = vmatpush1.msra.mxu0 0.0
    %86 = vmatprep.subr.mxu0 0.0
    %87 = vmatpush1.msra.mxu0 0.0
    %88 = vmatprep.subr.mxu0 0.0
    %89 = vmatpush1.msra.mxu0 0.0
    %90 = vmatprep.subr.mxu0 0.0
    %91 = vmatpush1.msra.mxu0 0.0
    %92 = vmatprep.subr.mxu0 0.0
    %93 = vmatpush1.msra.mxu0 0.0
    %94 = vmatprep.mubr.f32.mxu0 0.0
    %95 = vmatmul.mubr.f32.gmra.mrb[0].mxu0 %v25
    %v96 = vpop.f32.mrb[0].mxu0
    %v97 = vadd.f32 0.0, %v96
    %v98 = vpop.f32.mrb[0].mxu0
    %99 = vmatprep.mubr.f32.mxu0 0.0
    %100 = vmatmul.mubr.f32.gmra.mrb[0].mxu0 %v28
    %v101 = vpop.f32.mrb[0].mxu0
    %v102 = vadd.f32 0.0, %v101
    %v103 = vpop.f32.mrb[0].mxu0
    %104 = vdwg.mxu0
    %v105 = vld [vmem:[%s2] sm:$0xff]
    %v106 = vld [vmem:[%s2 + $0x8] sm:$0xff]
    %v107 = vld [vmem:[%s2 + $0x10] sm:$0xff]
    %v108 = vld [vmem:[%s2 + $0x18] sm:$0xff]
    %v109 = vld [vmem:[%s2 + $0x20] sm:$0xff]
    %v110 = vld [vmem:[%s2 + $0x28] sm:$0xff]
    %v111 = vld [vmem:[%s2 + $0x30] sm:$0xff]
    %v112 = vld [vmem:[%s2 + $0x38] sm:$0xff]
    %v113 = vld [vmem:[%s2 + $0x40] sm:$0xff]
    %v114 = vld [vmem:[%s2 + $0x48] sm:$0xff]
    %v115 = vld [vmem:[%s2 + $0x50] sm:$0xff]
    %v116 = vld [vmem:[%s2 + $0x58] sm:$0xff]
    %v117 = vld [vmem:[%s2 + $0x60] sm:$0xff]
    %v118 = vld [vmem:[%s2 + $0x68] sm:$0xff]
    %v119 = vld [vmem:[%s2 + $0x70] sm:$0xff]
    %v120 = vld [vmem:[%s2 + $0x78] sm:$0xff]
    %121 = vmatprep.subr.mxu0 0.0
    %122 = vmatpush1.msra.mxu0 %v105
    %123 = vmatprep.subr.mxu0 0.0
    %124 = vmatpush1.msra.mxu0 %v106
    %125 = vmatprep.subr.mxu0 0.0
    %126 = vmatpush1.msra.mxu0 %v107
    %127 = vmatprep.subr.mxu0 0.0
    %128 = vmatpush1.msra.mxu0 %v108
    %129 = vmatprep.subr.mxu0 0.0
    %130 = vmatpush1.msra.mxu0 %v109
    %131 = vmatprep.subr.mxu0 0.0
    %132 = vmatpush1.msra.mxu0 %v110
    %133 = vmatprep.subr.mxu0 0.0
    %134 = vmatpush1.msra.mxu0 %v111
    %135 = vmatprep.subr.mxu0 0.0
    %136 = vmatpush1.msra.mxu0 %v112
    %137 = vmatprep.subr.mxu0 0.0
    %138 = vmatpush1.msra.mxu0 %v113
    %139 = vmatprep.subr.mxu0 0.0
    %140 = vmatpush1.msra.mxu0 %v114
    %141 = vmatprep.subr.mxu0 0.0
    %142 = vmatpush1.msra.mxu0 %v115
    %143 = vmatprep.subr.mxu0 0.0
    %144 = vmatpush1.msra.mxu0 %v116
    %145 = vmatprep.subr.mxu0 0.0
    %146 = vmatpush1.msra.mxu0 %v117
    %147 = vmatprep.subr.mxu0 0.0
    %148 = vmatpush1.msra.mxu0 %v118
    %149 = vmatprep.subr.mxu0 0.0
    %150 = vmatpush1.msra.mxu0 %v119
    %151 = vmatprep.subr.mxu0 0.0
    %152 = vmatpush1.msra.mxu0 %v120
    %153 = vmatprep.subr.mxu0 0.0
    %154 = vmatpush1.msra.mxu0 0.0
    %155 = vmatprep.subr.mxu0 0.0
    %156 = vmatpush1.msra.mxu0 0.0
    %157 = vmatprep.subr.mxu0 0.0
    %158 = vmatpush1.msra.mxu0 0.0
    %159 = vmatprep.subr.mxu0 0.0
    %160 = vmatpush1.msra.mxu0 0.0
    %161 = vmatprep.subr.mxu0 0.0
    %162 = vmatpush1.msra.mxu0 0.0
    %163 = vmatprep.subr.mxu0 0.0
    %164 = vmatpush1.msra.mxu0 0.0
    %165 = vmatprep.subr.mxu0 0.0
    %166 = vmatpush1.msra.mxu0 0.0
    %167 = vmatprep.subr.mxu0 0.0
    %168 = vmatpush1.msra.mxu0 0.0
    %169 = vmatprep.subr.mxu0 0.0
    %170 = vmatpush1.msra.mxu0 0.0
    %171 = vmatprep.subr.mxu0 0.0
    %172 = vmatpush1.msra.mxu0 0.0
    %173 = vmatprep.subr.mxu0 0.0
    %174 = vmatpush1.msra.mxu0 0.0
    %175 = vmatprep.subr.mxu0 0.0
    %176 = vmatpush1.msra.mxu0 0.0
    %177 = vmatprep.subr.mxu0 0.0
    %178 = vmatpush1.msra.mxu0 0.0
    %179 = vmatprep.subr.mxu0 0.0
    %180 = vmatpush1.msra.mxu0 0.0
    %181 = vmatprep.subr.mxu0 0.0
    %182 = vmatpush1.msra.mxu0 0.0
    %183 = vmatprep.subr.mxu0 0.0
    %184 = vmatpush1.msra.mxu0 0.0
    %185 = vmatprep.mubr.f32.mxu0 0.0
    %186 = vmatmul.mubr.f32.gmra.mrb[0].mxu0 %v97
    %v187 = vpop.f32.mrb[0].mxu0
    %v188 = vadd.f32 0.0, %v187
    %v189 = vpop.f32.mrb[0].mxu0
    %190 = vmatprep.mubr.f32.mxu0 0.0
    %191 = vmatmul.mubr.f32.gmra.mrb[0].mxu0 %v102
    %v192 = vpop.f32.mrb[0].mxu0
    %v193 = vadd.f32 0.0, %v192
    %v194 = vpop.f32.mrb[0].mxu0
    %195 = vdwg.mxu0
    %vm196 = vcmask 64512
    %197 = vst.msk [vmem:[%s4] sm:$0xff] %vm196, %v188
    %198 = vst.msk [vmem:[%s4 + $0x8] sm:$0xff] %vm196, %v193
    %v199 = vpack.c.bf16 %v102, %v97
    %v201 = vunpack.c.l.b16 %v199
    %v202 = vunpack.c.h.b16 %v199
    %v203 = vpack.c.b16 %v201, %v201
    %v204 = vpack.c.b16 %v202, %v202
    %207 = vst [vmem:[#allocation2] sm:$0xf] %v203
    %208 = vst [vmem:[#allocation2 + $0x4] sm:$0xf] %v204
    // Predicated region
    $region14: #{tpu_custom_call.1} parent=1 // pred_check
      _
    $region15: #{tpu_custom_call.1} parent=1 // pred_check_branch
      %210 = sbr.rel (0) target = $region17
    $region16: #{tpu_custom_call.1} parent=1 // pred_region
      %s212 = ssub.s32 128, 128
      %213 = vsyncadd [#allocation3], %s212
      %s214 = sshll.u32 [#allocation2], 4
      %s215 = int_to_ptr.vmem [resolvable:$true] %s214
      %220 = dma.vmem_to_hbm [thread:$0]  %s215, 128, %s3, [#allocation3], 64, 64, 4
    $region17: #{tpu_custom_call.1} parent=1 // pred_fallthru
      _
    // Predicated region
    $region18: #{tpu_custom_call.1} parent=1 // pred_check
      _
    $region19: #{tpu_custom_call.1} parent=1 // pred_check_branch
      %222 = sbr.rel (0) target = $region21
    $region20: #{tpu_custom_call.1} parent=1 // pred_region
      _
    $region21: #{tpu_custom_call.1} parent=1 // pred_fallthru
      _
    // Predicated region
    $region22: #{tpu_custom_call.1} parent=1 // pred_check
      _
    $region23: #{tpu_custom_call.1} parent=1 // pred_check_branch
      %224 = sbr.rel (0) target = $region25
    $region24: #{tpu_custom_call.1} parent=1 // pred_region
      %225 = dma.done [#allocation3], 128
    $region25: #{tpu_custom_call.1} parent=1 // pred_fallthru
      _
    // Predicated region
    $region26: #{tpu_custom_call.1} parent=1 // pred_check
      _
    $region27: #{tpu_custom_call.1} parent=1 // pred_check_branch
      %227 = sbr.rel (0) target = $region29
    $region28: #{tpu_custom_call.1} parent=1 // pred_region
      _
    $region29: #{tpu_custom_call.1} parent=1 // pred_fallthru
      _
    %228 = vsyncpa [#allocation3], 1

</llo_original>
